<compile_context>
chip_gen: v6e
topology: v6e:2x2x1
jax: 0.10.0
libtpu: 0.0.40
codegen_flags: <defaults>
</compile_context>

<pallas_src>
import math

import numpy as np
import jax
import jax.numpy as jnp
from jax.experimental import pallas as pl
from jax.experimental.pallas import tpu as pltpu


def _quadruple(v):
    return tuple(v) if isinstance(v, (tuple, list)) else (v,) * 4


def _round_up(x, m):
    return (x + m - 1) // m * m


# Conservative tile budget so double-buffered tiles fit the default scoped
# VMEM on every generation (v5e 16 MiB default, v7x 64 MiB physical).
_TILE_VMEM_BUDGET = 16 * 1024 * 1024
_VMEM_LIMIT_BYTES = 32 * 1024 * 1024
_TN_MAX = 4096          # lanes per output tile (multiple of 128)
_TK_MAX = 2048          # K elements per reduction tile


def _conv4d_matmul_kernel(w_ref, p_ref, o_ref, acc_ref):
    # w_ref  : (co_pad, TK)  weight K-tile (constant across b/n steps)
    # p_ref  : (TK, TN)      im2col patch tile, lane-dense spatial on lanes
    # o_ref  : (co_pad, TN)  f32 output tile (written on last K step)
    # acc_ref: (co_pad, TN)  f32 VMEM accumulator
    @pl.when(pl.program_id(2) == 0)
    def _init():
        acc_ref[...] = jnp.zeros_like(acc_ref)

    acc_ref[...] += jnp.dot(w_ref[...], p_ref[...],
                            preferred_element_type=jnp.float32)

    @pl.when(pl.program_id(2) == pl.num_programs(2) - 1)
    def _finalize():
        o_ref[...] = acc_ref[...].astype(o_ref.dtype)


def conv4d(x, weight, *, stride=(1, 1, 1, 1), padding=(0, 0, 0, 0),
           dilation=(1, 1, 1, 1), bias=None, compute_dtype=jnp.bfloat16):
    """x: (B, C_in, L, D, H, W); weight: (C_out, C_in, l_k, d_k, h_k, w_k)."""
    stride = _quadruple(stride)
    padding = _quadruple(padding)
    dilation = _quadruple(dilation)

    B, c_in, L, D, H, W = x.shape
    c_out = weight.shape[0]
    l_k, d_k, h_k, w_k = weight.shape[2:]
    l_s, d_s, h_s, w_s = stride
    l_p, d_p, h_p, w_p = padding
    l_d, d_d, h_d, w_d = dilation

    l_o = (L + 2 * l_p - l_k - (l_k - 1) * (l_d - 1)) // l_s + 1
    d_o = (D + 2 * d_p - d_k - (d_k - 1) * (d_d - 1)) // d_s + 1
    h_o = (H + 2 * h_p - h_k - (h_k - 1) * (h_d - 1)) // h_s + 1
    w_o = (W + 2 * w_p - w_k - (w_k - 1) * (w_d - 1)) // w_s + 1
    n_pos = l_o * d_o * h_o * w_o
    n_taps = l_k * d_k * h_k * w_k
    k_dim = n_taps * c_in

    compute_dtype = jnp.dtype(compute_dtype)
    in_bytes = compute_dtype.itemsize
    pack = 16 if in_bytes < 4 else 8          # sublane packing for the dtype

    # ---- tiling decisions -------------------------------------------------
    co_pad = _round_up(c_out, pack)
    if k_dim <= _TK_MAX:
        k_pad = _round_up(k_dim, pack)
        tk = k_pad
    else:
        tk = _TK_MAX                           # multiple of 128 -> fine on lanes
        k_pad = _round_up(k_dim, tk)
    n_k = k_pad // tk

    # TN from VMEM budget: 2x patch tile (double-buffer) + f32 acc + 2x f32 out.
    per_col_bytes = 2 * tk * in_bytes + 3 * co_pad * 4
    tn = (_TILE_VMEM_BUDGET // per_col_bytes) // 128 * 128
    tn = max(128, min(tn, _TN_MAX))
    tn = min(tn, _round_up(n_pos, 128))        # don't over-pad small problems
    n_pad = _round_up(n_pos, tn)
    n_n = n_pad // tn

    # ---- layout glue (plain XLA): cast once, zero-pad, im2col --------------
    # Cast first so every downstream intermediate (pad, taps, concat) is half
    # the bytes; accumulation inside the kernel stays f32.
    x_c = x.astype(compute_dtype)
    x_p = jnp.pad(x_c, ((0, 0), (0, 0), (l_p, l_p), (d_p, d_p),
                        (h_p, h_p), (w_p, w_p)))

    taps = []
    for kl in range(l_k):
        for kd in range(d_k):
            for kh in range(h_k):
                for kw in range(w_k):
                    start = (0, 0, kl * l_d, kd * d_d, kh * h_d, kw * w_d)
                    limit = (B, c_in,
                             start[2] + (l_o - 1) * l_s + 1,
                             start[3] + (d_o - 1) * d_s + 1,
                             start[4] + (h_o - 1) * h_s + 1,
                             start[5] + (w_o - 1) * w_s + 1)
                    xs = jax.lax.slice(x_p, start, limit,
                                       (1, 1, l_s, d_s, h_s, w_s))
                    tap = xs.reshape(B, c_in, n_pos)
                    if n_pad != n_pos:
                        # Fold N padding into each tap -> no extra full-slab pad pass.
                        tap = jnp.pad(tap, ((0, 0), (0, 0), (0, n_pad - n_pos)))
                    taps.append(tap)
    if k_pad != k_dim:
        # Explicit zero K-padding block (never read garbage past K).
        taps.append(jnp.zeros((B, k_pad - k_dim, n_pad), compute_dtype))
    # (B, K_pad, N_pad): tap-major, c_in inner.
    patches = jnp.concatenate(taps, axis=1)

    # weight -> (C_out, K) with matching K order (tap-major, c_in inner).
    w2 = jnp.transpose(weight, (0, 2, 3, 4, 5, 1)).reshape(c_out, k_dim)
    w2 = jnp.pad(w2, ((0, co_pad - c_out), (0, k_pad - k_dim)))
    w2 = w2.astype(compute_dtype)

    cost = pl.CostEstimate(
        flops=2 * B * co_pad * k_pad * n_pad,
        transcendentals=0,
        bytes_accessed=(patches.size * in_bytes + w2.size * in_bytes
                        + B * co_pad * n_pad * 4),
    )

    out_flat = pl.pallas_call(
        _conv4d_matmul_kernel,
        out_shape=jax.ShapeDtypeStruct((B, co_pad, n_pad), jnp.float32),
        grid=(B, n_n, n_k),
        in_specs=[
            # Weight K-tile: index depends only on k -> resident across b/n.
            pl.BlockSpec((co_pad, tk), lambda b, n, k: (0, k)),
            # Patches: lane-dense (TK, TN) tile per (batch, n-tile, k-tile).
            pl.BlockSpec((None, tk, tn), lambda b, n, k: (b, k, n)),
        ],
        # Output index independent of k (reduction axis) -> accumulator stays
        # resident; TN multiple of 128 keeps stores full-vreg unmasked.
        out_specs=pl.BlockSpec((None, co_pad, tn), lambda b, n, k: (b, 0, n)),
        scratch_shapes=[pltpu.VMEM((co_pad, tn), jnp.float32)],
        compiler_params=pltpu.CompilerParams(
            dimension_semantics=("parallel", "parallel", "arbitrary"),
            vmem_limit_bytes=_VMEM_LIMIT_BYTES),
        cost_estimate=cost,
    )(w2, patches)

    # Already NC-ordered: strip padding, un-flatten spatial, bias in f32,
    # cast back to the input dtype last.
    out = out_flat[:, :c_out, :n_pos].reshape(B, c_out, l_o, d_o, h_o, w_o)
    if bias is not None:
        out = out + bias.astype(jnp.float32).reshape(1, -1, 1, 1, 1, 1)
    return out.astype(x.dtype)


def conv4d_reference(x, w, stride, padding, dilation):
    """Pure numpy reference matching the PyTorch Conv4d forward semantics."""
    x = np.asarray(x, np.float32)
    w = np.asarray(w, np.float32)
    l_k, d_k, h_k, w_k = w.shape[2:]
    l_s, d_s, h_s, w_s = stride
    l_p, d_p, h_p, w_p = padding
    l_d, d_d, h_d, w_d = dilation
    B, c_in, L, D, H, W = x.shape
    c_out = w.shape[0]
    l_o = (L + 2 * l_p - l_k - (l_k - 1) * (l_d - 1)) // l_s + 1
    d_o = (D + 2 * d_p - d_k - (d_k - 1) * (d_d - 1)) // d_s + 1
    h_o = (H + 2 * h_p - h_k - (h_k - 1) * (h_d - 1)) // h_s + 1
    w_o = (W + 2 * w_p - w_k - (w_k - 1) * (w_d - 1)) // w_s + 1
    xp = np.pad(x, ((0, 0), (0, 0), (l_p, l_p), (d_p, d_p), (h_p, h_p), (w_p, w_p)))
    out = np.zeros((B, c_out, l_o, d_o, h_o, w_o), np.float32)
    for kl in range(l_k):
        for kd in range(d_k):
            for kh in range(h_k):
                for kw in range(w_k):
                    xs = xp[:, :,
                            kl * l_d: kl * l_d + (l_o - 1) * l_s + 1: l_s,
                            kd * d_d: kd * d_d + (d_o - 1) * d_s + 1: d_s,
                            kh * h_d: kh * h_d + (h_o - 1) * h_s + 1: h_s,
                            kw * w_d: kw * w_d + (w_o - 1) * w_s + 1: w_s]
                    out += np.einsum('bcldhw,oc->boldhw', xs,
                                     w[:, :, kl, kd, kh, kw])
    return out


if __name__ == "__main__":
    # Module config: Conv4d(in_channels=4, out_channels=8, kernel_size=2)
    # defaults: stride=1, padding=0, dilation=1, groups=1, bias=False.
    B, C_IN, C_OUT = 2, 4, 8
    L = D = H = W = 5
    KSIZE = (2, 2, 2, 2)
    STRIDE = (1, 1, 1, 1)
    PADDING = (0, 0, 0, 0)
    DILATION = (1, 1, 1, 1)

    key = jax.random.PRNGKey(0)
    kx, kw = jax.random.split(key)
    x = jax.random.normal(kx, (B, C_IN, L, D, H, W), jnp.float32)

    # Deterministic init matching kaiming_uniform_(a=sqrt(5)):
    # bound = 1/sqrt(fan_in), fan_in = C_in * prod(kernel_size).
    fan_in = C_IN * KSIZE[0] * KSIZE[1] * KSIZE[2] * KSIZE[3]
    bound = 1.0 / math.sqrt(fan_in)
    weight = jax.random.uniform(kw, (C_OUT, C_IN) + KSIZE, jnp.float32,
                                minval=-bound, maxval=bound)
    # bias=False in the module default -> no bias term.

    out = conv4d(x, weight, stride=STRIDE, padding=PADDING, dilation=DILATION)
    out = jax.block_until_ready(out)

    ref = conv4d_reference(np.asarray(x), np.asarray(weight),
                           STRIDE, PADDING, DILATION)
    # bf16 compute with f32 accumulation: loosen tolerance accordingly.
    np.testing.assert_allclose(np.asarray(out), ref, rtol=2e-2, atol=2e-2)
    assert out.shape == (B, C_OUT, L - 1, D - 1, H - 1, W - 1)

    print("KERNEL_OK")
</pallas_src>

<mosaic_0001>
module attributes {stable_mosaic.version = 11 : i64} {
  func.func @_conv4d_matmul_kernel(%arg0: i32, %arg1: i32, %arg2: i32, %arg3: memref<16x64xbf16, #tpu.memory_space<vmem>>, %arg4: memref<1x64x256xbf16, #tpu.memory_space<vmem>>, %arg5: memref<1x16x256xf32, #tpu.memory_space<vmem>>, %arg6: memref<16x256xf32, #tpu.memory_space<vmem>>) attributes {dimension_semantics = [#tpu.dimension_semantics<parallel>, #tpu.dimension_semantics<parallel>, #tpu.dimension_semantics<arbitrary>], iteration_bounds = array<i64: 2, 1, 1>, scalar_prefetch = 0 : i64, scratch_operands = 1 : i64, tpu.core_type = #tpu.core_type<tc>, window_params = [{transform_indices = @transform_0, window_bounds = array<i64: 16, 64>}, {transform_indices = @transform_1, window_bounds = array<i64: 1, 64, 256>}, {transform_indices = @transform_2, window_bounds = array<i64: 1, 16, 256>}]} {
    %c0_i32 = arith.constant 0 : i32
    %0 = arith.cmpi eq, %arg2, %c0_i32 : i32
    %1 = arith.extui %0 : i1 to i32
    %c0_i32_0 = arith.constant 0 : i32
    %2 = arith.cmpi ne, %1, %c0_i32_0 : i32
    scf.if %2 {
      %cst_11 = arith.constant 0.000000e+00 : f32
      %13 = vector.broadcast %cst_11 : f32 to vector<16x256xf32>
      %c0_12 = arith.constant 0 : index
      %c0_13 = arith.constant 0 : index
      %14 = vector.load %arg6[%c0_12, %c0_13] : memref<16x256xf32, #tpu.memory_space<vmem>>, vector<16x256xf32>
      tpu.vector_store %arg6[%c0_12, %c0_13], %13 {strides = array<i32>} : memref<16x256xf32, #tpu.memory_space<vmem>>, vector<16x256xf32>,
    } else {
    }
    %c0 = arith.constant 0 : index
    %c0_1 = arith.constant 0 : index
    %3 = vector.load %arg6[%c0, %c0_1] : memref<16x256xf32, #tpu.memory_space<vmem>>, vector<16x256xf32>
    %c0_2 = arith.constant 0 : index
    %c0_3 = arith.constant 0 : index
    %4 = vector.load %arg3[%c0_2, %c0_3] : memref<16x64xbf16, #tpu.memory_space<vmem>>, vector<16x64xbf16>
    %c0_4 = arith.constant 0 : index
    %c0_5 = arith.constant 0 : index
    %c0_6 = arith.constant 0 : index
    %5 = vector.load %arg4[%c0_4, %c0_5, %c0_6] : memref<1x64x256xbf16, #tpu.memory_space<vmem>>, vector<1x64x256xbf16>
    %6 = vector.shape_cast %5 : vector<1x64x256xbf16> to vector<64x256xbf16>
    %cst = arith.constant dense<0.000000e+00> : vector<16x256xf32>
    %7 = tpu.matmul %4, %6, %cst {dimension_numbers = #tpu.dot_dimension_numbers<[1], [0], [0], [1], [0, 0, 1, 1], [], []>} : vector<16x64xbf16>, vector<64x256xbf16>, vector<16x256xf32> -> vector<16x256xf32>
    %8 = arith.addf %3, %7 : vector<16x256xf32>
    %c0_7 = arith.constant 0 : index
    %c0_8 = arith.constant 0 : index
    %9 = vector.load %arg6[%c0_7, %c0_8] : memref<16x256xf32, #tpu.memory_space<vmem>>, vector<16x256xf32>
    tpu.vector_store %arg6[%c0_7, %c0_8], %8 {strides = array<i32>} : memref<16x256xf32, #tpu.memory_space<vmem>>, vector<16x256xf32>,
    %c0_i32_9 = arith.constant 0 : i32
    %10 = arith.cmpi eq, %arg2, %c0_i32_9 : i32
    %11 = arith.extui %10 : i1 to i32
    %c0_i32_10 = arith.constant 0 : i32
    %12 = arith.cmpi ne, %11, %c0_i32_10 : i32
    scf.if %12 {
      %c0_11 = arith.constant 0 : index
      %c0_12 = arith.constant 0 : index
      %13 = vector.load %arg6[%c0_11, %c0_12] : memref<16x256xf32, #tpu.memory_space<vmem>>, vector<16x256xf32>
      %c0_13 = arith.constant 0 : index
      %c0_14 = arith.constant 0 : index
      %c0_15 = arith.constant 0 : index
      %14 = vector.load %arg5[%c0_13, %c0_14, %c0_15] : memref<1x16x256xf32, #tpu.memory_space<vmem>>, vector<1x16x256xf32>
      %15 = vector.shape_cast %14 : vector<1x16x256xf32> to vector<16x256xf32>
      %16 = vector.shape_cast %13 : vector<16x256xf32> to vector<1x16x256xf32>
      tpu.vector_store %arg5[%c0_13, %c0_14, %c0_15], %16 {strides = array<i32>} : memref<1x16x256xf32, #tpu.memory_space<vmem>>, vector<1x16x256xf32>,
    } else {
    }
    return
  }
  func.func @transform_0(%arg0: i32, %arg1: i32, %arg2: i32) -> (i32, i32) {
    %c0_i32 = arith.constant 0 : i32
    %c0_i32_0 = arith.constant 0 : i32
    return %c0_i32, %arg2 : i32, i32
  }
  func.func @transform_1(%arg0: i32, %arg1: i32, %arg2: i32) -> (i32, i32, i32) {
    %c0_i32 = arith.constant 0 : i32
    return %arg0, %arg2, %arg1 : i32, i32, i32
  }
  func.func @transform_2(%arg0: i32, %arg1: i32, %arg2: i32) -> (i32, i32, i32) {
    %c0_i32 = arith.constant 0 : i32
    %c0_i32_0 = arith.constant 0 : i32
    return %arg0, %c0_i32, %arg1 : i32, i32, i32
  }
}

</mosaic_0001>

<llo_original>
// kernel: tpu_custom_call.1
$region0: #{tpu_custom_call.1}
  #allocation0 [shape = 'u32[]', space=smem, size = 0x4, offset = 0x4, fixed_abs, tag = 'smem constant byte address 0x4 - core index']
  #allocation1 [shape = 'u32[144,128]{1,0:T(1,128)}', space=vmem, size = 0x12000, scoped, tag = 'internal scratch']
  #allocation2 [shape = 'f32[16,256]{1,0:T(8,128)}', space=vmem, size = 0x4000, scoped, tag = 'scratch operand']
  %s0 = inlined_call_operand.hbm [shape: bf16[16,64], index: 0, kind: input, shape index: {}]
  %s1 = inlined_call_operand.hbm [shape: bf16[2,64,256], index: 1, kind: input, shape index: {}]
  %s2 = inlined_call_operand.hbm [shape: f32[2,16,256], index: 2, kind: output, shape index: {}]
  %s3 = sld [smem:[#allocation0]]
  $region57: #{tpu_custom_call.1} parent=0
    _
  %s5 = ssub.s32 1, %s3
  %s6 = scalar_select 0, %s5, %s3
  $region1: #{tpu_custom_call.1} parent=0
    #allocation3 [shape = 'u8[4096]{0}', space=vmem, size = 0x1000, scoped, tag = 'input window, operand 0, single buffered']
    #allocation4 [shape = 's32[2]{0}', space=sflag, size = 0x8, scoped, tag = 'scoped memory for tpu_custom_call.1']
    #allocation5 [shape = 's32[2]{0}', space=sflag, size = 0x8, scoped, tag = 'scoped memory for tpu_custom_call.1']
    #allocation6 [shape = 'u8[65536]{0}', space=vmem, size = 0x10000, scoped, tag = 'input window, operand 1']
    #allocation7 [shape = 's32[2]{0}', space=sflag, size = 0x8, scoped, tag = 'scoped memory for tpu_custom_call.1']
    #allocation8 [shape = 'u8[32768]{0}', space=vmem, size = 0x8000, scoped, tag = 'output window, operand 0']
    %7 = vsyncpa [#allocation4], 0
    %8 = vsyncpa [#allocation7], 0
    %s9 = scalar_lea.sflag [#allocation7], 1
    %10 = vsyncpa %s9, 0
    %11 = vsyncpa [#allocation5], 0
    %s12 = scalar_lea.sflag [#allocation5], 1
    %13 = vsyncpa %s12, 0
    loop: start=0, step=1, limit=4
    $region2: #{tpu_custom_call.1} parent=1 // loop_pre_header
      _
    $region3: #{tpu_custom_call.1} parent=1 // loop_header
      %s15 = sphi 0, %s19
      %p16 = scmp.ge.s32.totalorder %s15, 4
      %s22 = sphi 0, %s41
      %s23 = sphi 0, %s37
      %s24 = sphi 0, %s33
      %s25 = sphi 0, %s22
      %s26 = sphi 0, %s23
      %s27 = sphi 0, %s24
      %s28 = sphi 0, %s25
      %s29 = sphi 0, %s26
      %s30 = sphi 0, %s27
      %s44 = sphi 0, %s46
      %s47 = sphi 0, %s44
      %s48 = sphi 0, %s47
      %s64 = sphi 0, %s48
      %s74 = sphi 0, %s76
      %s77 = sphi 0, %s74
      %s78 = sphi 0, %s77
      %s94 = sphi 0, %s78
      %s102 = sphi 0, %s104
      %s105 = sphi 0, %s102
      %s106 = sphi 0, %s105
      %s122 = sphi 0, %s106
    $region4: #{tpu_custom_call.1} parent=1 // loop_header_branch
      %18 = sbr.rel (%p16) target = $region8
    $region5: #{tpu_custom_call.1} parent=1 // loop_body
      %s20 = ssub.s32 %s15, 1
      %s21 = ssub.s32 %s15, 2
      %s31 = sadd.s32 1, %s24
      %p32 = scmp.ge.s32.totalorder %s31, 1
      %s33 = scalar_select %p32, 0, %s31
      %s34 = sadd.s32 1, %s23
      %s35 = scalar_select %p32, %s34, %s23
      %p36 = scmp.ge.s32.totalorder %s35, 1
      %s37 = scalar_select %p36, 0, %s35
      %s38 = sadd.s32 1, %s22
      %s39 = scalar_select %p36, %s38, %s22
      %p40 = scmp.ge.s32.totalorder %s39, 2
      %s41 = scalar_select %p40, 0, %s39
      %s42 = ssub.s32 %s24, %s33
      %p43 = scmp.eq.s32.totalorder %s42, 0
      %s45 = sadd.s32 %s44, 1
      %s46 = scalar_select %p43, %s44, %s45
      %p49 = pneg %p43
      %p50 = scmp.eq.s32.totalorder %s15, 1
      %p51 = por %p49, %p50
      %p52 = scmp.ne.s32.totalorder %s44, %s47
      %p53 = scmp.eq.s32.totalorder %s15, 0
      %p54 = por %p52, %p53
      %p55 = scmp.ne.s32.totalorder %s44, %s47
      %p56 = scmp.eq.s32.totalorder %s20, 1
      %p57 = por %p55, %p56
      %p58 = scmp.ne.s32.totalorder %s47, %s48
      %p59 = scmp.eq.s32.totalorder %s20, 0
      %p60 = por %p58, %p59
      %p61 = scmp.ne.s32.totalorder %s47, %s48
      %p62 = scmp.eq.s32.totalorder %s21, 1
      %p63 = por %p61, %p62
      %p65 = scmp.ne.s32.totalorder %s48, %s64
      %p66 = scmp.eq.s32.totalorder %s21, 0
      %p67 = por %p65, %p66
      %s68 = ssub.s32 %s22, %s41
      %s69 = ssub.s32 %s24, %s33
      %s70 = sor.u32 %s68, %s69
      %s71 = ssub.s32 %s23, %s37
      %s72 = sor.u32 %s70, %s71
      %p73 = scmp.eq.s32.totalorder %s72, 0
      %s75 = sadd.s32 %s74, 1
      %s76 = scalar_select %p73, %s74, %s75
      %p79 = pneg %p73
      %p80 = scmp.eq.s32.totalorder %s15, 1
      %p81 = por %p79, %p80
      %p82 = scmp.ne.s32.totalorder %s74, %s77
      %p83 = scmp.eq.s32.totalorder %s15, 0
      %p84 = por %p82, %p83
      %p85 = scmp.ne.s32.totalorder %s74, %s77
      %p86 = scmp.eq.s32.totalorder %s20, 1
      %p87 = por %p85, %p86
      %p88 = scmp.ne.s32.totalorder %s77, %s78
      %p89 = scmp.eq.s32.totalorder %s20, 0
      %p90 = por %p88, %p89
      %p91 = scmp.ne.s32.totalorder %s77, %s78
      %p92 = scmp.eq.s32.totalorder %s21, 1
      %p93 = por %p91, %p92
      %p95 = scmp.ne.s32.totalorder %s78, %s94
      %p96 = scmp.eq.s32.totalorder %s21, 0
      %p97 = por %p95, %p96
      %s98 = ssub.s32 %s22, %s41
      %s99 = ssub.s32 %s23, %s37
      %s100 = sor.u32 %s98, %s99
      %p101 = scmp.eq.s32.totalorder %s100, 0
      %s103 = sadd.s32 %s102, 1
      %s104 = scalar_select %p101, %s102, %s103
      %p107 = pneg %p101
      %p108 = scmp.eq.s32.totalorder %s15, 1
      %p109 = por %p107, %p108
      %p110 = scmp.ne.s32.totalorder %s102, %s105
      %p111 = scmp.eq.s32.totalorder %s15, 0
      %p112 = por %p110, %p111
      %p113 = scmp.ne.s32.totalorder %s102, %s105
      %p114 = scmp.eq.s32.totalorder %s20, 1
      %p115 = por %p113, %p114
      %p116 = scmp.ne.s32.totalorder %s105, %s106
      %p117 = scmp.eq.s32.totalorder %s20, 0
      %p118 = por %p116, %p117
      %p119 = scmp.ne.s32.totalorder %s105, %s106
      %p120 = scmp.eq.s32.totalorder %s21, 1
      %p121 = por %p119, %p120
      %p123 = scmp.ne.s32.totalorder %s106, %s122
      %p124 = scmp.eq.s32.totalorder %s21, 0
      %p125 = por %p123, %p124
      %p126 = scmp.le.s32.totalorder 1, %s15
      %p127 = scmp.lt.s32.totalorder %s15, 3
      %p128 = pnand %p126, %p127
      %p129 = pneg %p128
      // Predicated region
      $region9: #{tpu_custom_call.1} parent=5 // pred_check
        _
      $region10: #{tpu_custom_call.1} parent=5 // pred_check_branch
        %131 = sbr.rel (%p128) target = $region12
      $region11: #{tpu_custom_call.1} parent=5 // pred_region
        %s132 = ssub.s32 %s15, 1
        // Predicated region
        $region13: #{tpu_custom_call.1} parent=11 // pred_check
          %p133 = pneg %p60
        $region14: #{tpu_custom_call.1} parent=11 // pred_check_branch
          %135 = sbr.rel (%p133) target = $region16
        $region15: #{tpu_custom_call.1} parent=11 // pred_region
          %s137 = ssub.s32 128, 128
          %138 = vsyncadd [#allocation4], %s137
          %s139 = smul.addr %s27, 64
          %s140 = scalar_lea.hbm %s0, %s139
          %s141 = sshll.u32 [#allocation3], 4
          %s142 = int_to_ptr.vmem [resolvable:$true] %s141
          %147 = dma.hbm_to_vmem [thread:$0]  %s140, 128, %s142, [#allocation4], 64, 64, 4
        $region16: #{tpu_custom_call.1} parent=11 // pred_fallthru
          _
      $region12: #{tpu_custom_call.1} parent=5 // pred_fallthru
        _
      %p148 = scmp.lt.s32.totalorder %s15, 2
      // Predicated region
      $region17: #{tpu_custom_call.1} parent=5 // pred_check
        %p149 = pneg %p148
      $region18: #{tpu_custom_call.1} parent=5 // pred_check_branch
        %151 = sbr.rel (%p149) target = $region20
      $region19: #{tpu_custom_call.1} parent=5 // pred_region
        // Predicated region
        $region21: #{tpu_custom_call.1} parent=19 // pred_check
          %p152 = pneg %p84
        $region22: #{tpu_custom_call.1} parent=19 // pred_check_branch
          %154 = sbr.rel (%p152) target = $region24
        $region23: #{tpu_custom_call.1} parent=19 // pred_region
          %s155 = sand.u32 %s74, 1
          %s156 = scalar_lea.sflag [#allocation7], %s155
          %s157 = sand.u32 %s74, 1
          %s158 = smul.addr %s157, 64
          %s159 = scalar_lea.vmem [#allocation6], %s158
          %s160 = smul.u32 8, %s24
          %s161 = smul.u32 2, %s23
          %s163 = ssub.s32 1024, 1024
          %164 = vsyncadd %s156, %s163
          %s165 = smul.addr %s160, 2
          %s166 = sadd.s32 %s161, %s165
          %s167 = smul.addr %s22, 16
          %s168 = sadd.s32 %s166, %s167
          %s169 = smul.addr %s168, 64
          %s170 = scalar_lea.hbm %s1, %s169
          %s171 = sshll.u32 %s159, 4
          %s172 = int_to_ptr.vmem [resolvable:$true] %s171
          %177 = dma.hbm_to_vmem [thread:$0]  %s170, 1024, %s172, %s156, 128, 128, 8
        $region24: #{tpu_custom_call.1} parent=19 // pred_fallthru
          _
      $region20: #{tpu_custom_call.1} parent=5 // pred_fallthru
        _
      %p178 = scmp.le.s32.totalorder 1, %s15
      %p179 = scmp.lt.s32.totalorder %s15, 3
      %p180 = pnand %p178, %p179
      %p181 = pneg %p180
      // Predicated region
      $region25: #{tpu_custom_call.1} parent=5 // pred_check
        _
      $region26: #{tpu_custom_call.1} parent=5 // pred_check_branch
        %183 = sbr.rel (%p180) target = $region28
      $region27: #{tpu_custom_call.1} parent=5 // pred_region
        %s184 = ssub.s32 %s15, 1
        // Predicated region
        $region29: #{tpu_custom_call.1} parent=27 // pred_check
          %p185 = pneg %p60
        $region30: #{tpu_custom_call.1} parent=27 // pred_check_branch
          %187 = sbr.rel (%p185) target = $region32
        $region31: #{tpu_custom_call.1} parent=27 // pred_region
          %188 = dma.done [#allocation4], 128
        $region32: #{tpu_custom_call.1} parent=27 // pred_fallthru
          _
        %s189 = sand.u32 %s77, 1
        %s190 = scalar_lea.sflag [#allocation7], %s189
        %s191 = sand.u32 %s77, 1
        %s192 = smul.addr %s191, 64
        %s193 = scalar_lea.vmem [#allocation6], %s192
        // Predicated region
        $region33: #{tpu_custom_call.1} parent=27 // pred_check
          %p194 = pneg %p90
        $region34: #{tpu_custom_call.1} parent=27 // pred_check_branch
          %196 = sbr.rel (%p194) target = $region36
        $region35: #{tpu_custom_call.1} parent=27 // pred_region
          %197 = dma.done %s190, 1024
        $region36: #{tpu_custom_call.1} parent=27 // pred_fallthru
          _
        %p198 = pneg %p60
        %p199 = pneg %p57
        %s200 = sand.u32 %s77, 1
        %s201 = scalar_lea.sflag [#allocation7], %s200
        %s202 = sand.u32 %s77, 1
        %s203 = smul.addr %s202, 64
        %s204 = scalar_lea.vmem [#allocation6], %s203
        %p205 = pneg %p90
        %p206 = pneg %p87
        %p207 = pneg %p118
        %p208 = pneg %p115
        %s209 = sand.u32 %s105, 1
        %s210 = scalar_lea.sflag [#allocation5], %s209
        %s211 = sand.u32 %s105, 1
        %s212 = smul.addr %s211, 32
        %s213 = scalar_lea.vmem [#allocation8], %s212
        %s214 = smul.u32 8, %s27
        %s215 = smul.u32 2, %s26
        %s216 = smul.u32 2, %s26
        %p218 = scmp.eq.s32.totalorder %s27, 0
        // Predicated region
        $region37: #{tpu_custom_call.1} parent=27 // pred_check
          %p219 = pneg %p218
        $region38: #{tpu_custom_call.1} parent=27 // pred_check_branch
          %221 = sbr.rel (%p219) target = $region40
        $region39: #{tpu_custom_call.1} parent=27 // pred_region
          %222 = vst [vmem:[#allocation2] sm:$0xff] 0.0
          %223 = vst [vmem:[#allocation2 + $0x8] sm:$0xff] 0.0
          %224 = vst [vmem:[#allocation2 + $0x10] sm:$0xff] 0.0
          %225 = vst [vmem:[#allocation2 + $0x18] sm:$0xff] 0.0
        $region40: #{tpu_custom_call.1} parent=27 // pred_fallthru
          _
        %v226 = vld [vmem:[#allocation2] sm:$0xff]
        %v227 = vld [vmem:[#allocation2 + $0x8] sm:$0xff]
        %v228 = vld [vmem:[#allocation2 + $0x10] sm:$0xff]
        %v229 = vld [vmem:[#allocation2 + $0x18] sm:$0xff]
        %v230 = vld [vmem:[#allocation3] sm:$0xf]
        %v231 = vld [vmem:[#allocation3 + $0x4] sm:$0xf]
        %v232 = vld [vmem:[%s193] sm:$0xff]
        %v233 = vld [vmem:[%s193 + $0x8] sm:$0xff]
        %v234 = vld [vmem:[%s193 + $0x10] sm:$0xff]
        %v235 = vld [vmem:[%s193 + $0x18] sm:$0xff]
        %v236 = vld [vmem:[%s193 + $0x20] sm:$0xff]
        %v237 = vld [vmem:[%s193 + $0x28] sm:$0xff]
        %v238 = vld [vmem:[%s193 + $0x30] sm:$0xff]
        %v239 = vld [vmem:[%s193 + $0x38] sm:$0xff]
        %v242 = vunpack.c.l.b16 %v230
        %v243 = vunpack.c.l.b16 %v231
        %v244 = vpack.c.b16 %v243, %v242
        %v253 = vunpack.c.l.b16 %v232
        %v254 = vunpack.c.h.b16 %v232
        %v255 = vunpack.c.l.b16 %v233
        %v256 = vunpack.c.h.b16 %v233
        %v257 = vunpack.c.l.b16 %v234
        %v258 = vunpack.c.h.b16 %v234
        %v259 = vunpack.c.l.b16 %v235
        %v260 = vunpack.c.h.b16 %v235
        %v261 = vunpack.c.l.b16 %v236
        %v262 = vunpack.c.h.b16 %v236
        %v263 = vunpack.c.l.b16 %v237
        %v264 = vunpack.c.h.b16 %v237
        %v265 = vunpack.c.l.b16 %v238
        %v266 = vunpack.c.h.b16 %v238
        %v267 = vunpack.c.l.b16 %v239
        %v268 = vunpack.c.h.b16 %v239
        %v269 = vpack.c.b16 %v255, %v253
        %v270 = vpack.c.b16 %v256, %v254
        %v271 = vpack.c.b16 %v259, %v257
        %v272 = vpack.c.b16 %v260, %v258
        %v273 = vpack.c.b16 %v263, %v261
        %v274 = vpack.c.b16 %v264, %v262
        %v275 = vpack.c.b16 %v267, %v265
        %v276 = vpack.c.b16 %v268, %v266
        %vm285 = vcmask 523264
        %v287 = vsel %vm285, %v244, 0
        %289 = vmatprep.subr.bf16.mxu0 0
        %290 = vmatpush1.bf16.msra.mxu0 0
        %291 = vmatprep.subr.bf16.mxu0 0
        %292 = vmatpush1.bf16.msra.mxu0 0
        %293 = vmatprep.subr.bf16.mxu0 0
        %294 = vmatpush1.bf16.msra.mxu0 0
        %295 = vmatprep.subr.bf16.mxu0 0
        %296 = vmatpush1.bf16.msra.mxu0 0
        %297 = vmatprep.subr.bf16.mxu0 %v276
        %298 = vmatpush1.bf16.msra.mxu0 %v275
        %299 = vmatprep.subr.bf16.mxu0 %v274
        %300 = vmatpush1.bf16.msra.mxu0 %v273
        %301 = vmatprep.subr.bf16.mxu0 %v272
        %302 = vmatpush1.bf16.msra.mxu0 %v271
        %303 = vmatprep.subr.bf16.mxu0 %v270
        %304 = vmatpush1.bf16.msra.mxu0 %v269
        %305 = vmatprep.subr.bf16.mxu0 0
        %306 = vmatpush2.bf16.msra.mxu0 0
        %307 = vmatprep.subr.bf16.mxu0 0
        %308 = vmatpush2.bf16.msra.mxu0 0
        %309 = vmatprep.subr.bf16.mxu0 0
        %310 = vmatpush2.bf16.msra.mxu0 0
        %311 = vmatprep.subr.bf16.mxu0 0
        %312 = vmatpush2.bf16.msra.mxu0 0
        %313 = vmatprep.subr.bf16.mxu0 0
        %314 = vmatpush2.bf16.msra.mxu0 0
        %315 = vmatprep.subr.bf16.mxu0 0
        %316 = vmatpush2.bf16.msra.mxu0 0
        %317 = vmatprep.subr.bf16.mxu0 0
        %318 = vmatpush2.bf16.msra.mxu0 0
        %319 = vmatprep.subr.bf16.mxu0 0
        %320 = vmatpush2.bf16.msra.mxu0 0
        %321 = vmatprep.mubr.bf16.mxu0 0
        %322 = vmatmul.mubr.bf16.gmra.mxu0 %v287
        %v323 = vpop.f32.mrf.mxu0
        %v324 = vadd.f32 0.0, %v323
        %v325 = vpop.f32.mrf.mxu0
        %v326 = vadd.f32 0.0, %v325
        %v327 = vpop.f32.mrf.mxu0
        %v328 = vadd.f32 0.0, %v327
        %v329 = vpop.f32.mrf.mxu0
        %v330 = vadd.f32 0.0, %v329
        %331 = vdwg.mxu0
        %v332 = vadd.f32 %v226, %v324
        %v333 = vadd.f32 %v227, %v326
        %v334 = vadd.f32 %v228, %v328
        %v335 = vadd.f32 %v229, %v330
        %336 = vst [vmem:[#allocation2] sm:$0xff] %v332
        %337 = vst [vmem:[#allocation2 + $0x8] sm:$0xff] %v333
        %338 = vst [vmem:[#allocation2 + $0x10] sm:$0xff] %v334
        %339 = vst [vmem:[#allocation2 + $0x18] sm:$0xff] %v335
        // Predicated region
        $region41: #{tpu_custom_call.1} parent=27 // pred_check
          %p340 = pneg %p218
        $region42: #{tpu_custom_call.1} parent=27 // pred_check_branch
          %342 = sbr.rel (%p340) target = $region44
        $region43: #{tpu_custom_call.1} parent=27 // pred_region
          %v343 = vld [vmem:[#allocation2] sm:$0xff]
          %v344 = vld [vmem:[#allocation2 + $0x8] sm:$0xff]
          %v345 = vld [vmem:[#allocation2 + $0x10] sm:$0xff]
          %v346 = vld [vmem:[#allocation2 + $0x18] sm:$0xff]
          %347 = vst [vmem:[%s213] sm:$0xff] %v343
          %348 = vst [vmem:[%s213 + $0x8] sm:$0xff] %v344
          %349 = vst [vmem:[%s213 + $0x10] sm:$0xff] %v345
          %350 = vst [vmem:[%s213 + $0x18] sm:$0xff] %v346
        $region44: #{tpu_custom_call.1} parent=27 // pred_fallthru
          _
        %s351 = sand.u32 %s105, 1
        %s352 = scalar_lea.sflag [#allocation5], %s351
        %s353 = sand.u32 %s105, 1
        %s354 = smul.addr %s353, 32
        %s355 = scalar_lea.vmem [#allocation8], %s354
        // Predicated region
        $region45: #{tpu_custom_call.1} parent=27 // pred_check
          %p356 = pneg %p115
        $region46: #{tpu_custom_call.1} parent=27 // pred_check_branch
          %358 = sbr.rel (%p356) target = $region48
        $region47: #{tpu_custom_call.1} parent=27 // pred_region
          %s359 = smul.u32 2, %s26
          %s361 = ssub.s32 512, 512
          %362 = vsyncadd %s352, %s361
          %s363 = smul.addr %s25, 4
          %s364 = sadd.s32 %s359, %s363
          %s365 = smul.addr %s364, 128
          %s366 = scalar_lea.hbm %s2, %s365
          %s367 = sshll.u32 %s355, 4
          %s368 = int_to_ptr.vmem [resolvable:$true] %s367
          %373 = dma.vmem_to_hbm [thread:$0]  %s368, 512, %s366, %s352, 256, 256, 16
        $region48: #{tpu_custom_call.1} parent=27 // pred_fallthru
          _
      $region28: #{tpu_custom_call.1} parent=5 // pred_fallthru
        _
      %p374 = scmp.le.s32.totalorder 2, %s15
      // Predicated region
      $region49: #{tpu_custom_call.1} parent=5 // pred_check
        %p375 = pneg %p374
      $region50: #{tpu_custom_call.1} parent=5 // pred_check_branch
        %377 = sbr.rel (%p375) target = $region52
      $region51: #{tpu_custom_call.1} parent=5 // pred_region
        %s378 = ssub.s32 %s15, 2
        // Predicated region
        $region53: #{tpu_custom_call.1} parent=51 // pred_check
          %p379 = pneg %p121
        $region54: #{tpu_custom_call.1} parent=51 // pred_check_branch
          %381 = sbr.rel (%p379) target = $region56
        $region55: #{tpu_custom_call.1} parent=51 // pred_region
          %s382 = sand.u32 %s106, 1
          %s383 = scalar_lea.sflag [#allocation5], %s382
          %s384 = sand.u32 %s106, 1
          %s385 = smul.addr %s384, 32
          %s386 = scalar_lea.vmem [#allocation8], %s385
          %387 = dma.done %s383, 512
        $region56: #{tpu_custom_call.1} parent=51 // pred_fallthru
          _
      $region52: #{tpu_custom_call.1} parent=5 // pred_fallthru
        _
    $region6: #{tpu_custom_call.1} parent=1 // loop_footer
      %s19 = sadd.s32 1, %s15
    $region7: #{tpu_custom_call.1} parent=1 // loop_footer_branch
      %14 = sbr.rel target = $region3
    $region8: #{tpu_custom_call.1} parent=1 // loop_exit
      _
    %388 = vsyncpa [#allocation4], 1
    %s389 = scalar_lea.sflag [#allocation4], 1
    %390 = vsyncpa %s389, 1
    %391 = vsyncpa [#allocation7], 1
    %s392 = scalar_lea.sflag [#allocation7], 1
    %393 = vsyncpa %s392, 1
    %394 = vsyncpa [#allocation5], 1
    %s395 = scalar_lea.sflag [#allocation5], 1
    %396 = vsyncpa %s395, 1

</llo_original>
